<compile_context>
chip_gen: v7x
topology: tpu7x:2x2x1
jax: 0.10.0
libtpu: 0.0.40
codegen_flags: <defaults>
</compile_context>

<pallas_src>
import jax
import jax.numpy as jnp
from jax.experimental import pallas as pl
from jax.experimental.pallas import tpu as pltpu


def _compute_range_indices(ppm):
    """Indices *into the masked arrays*, exactly as the PyTorch code computes them."""
    n = ppm.shape[0]
    idx = jnp.arange(n, dtype=jnp.int32)

    mask_le = ppm <= 4.0
    full_max = jnp.argmax(jnp.where(mask_le, ppm, -jnp.inf)).astype(jnp.int32)
    min_ind = jnp.sum((mask_le & (idx < full_max)).astype(jnp.int32))

    mask_ge = ppm >= 2.5
    full_min = jnp.argmin(jnp.where(mask_ge, ppm, jnp.inf)).astype(jnp.int32)
    max_ind = jnp.sum((mask_ge & (idx < full_min)).astype(jnp.int32))

    return min_ind, max_ind


# mm layout (int32[6], scalar prefetch in SMEM):
#   [0] min_ind   [1] max_ind   [2] first active block   [3] last active block
#   [4] half = ceil(num_active_blocks / 2)   [5] num_active_blocks
def _in_index_map(c, j, mm):
    first = mm[2]
    last = mm[3]
    half = mm[4]
    num_active = mm[5]
    # blocks handled by this core; clamp so wasted iterations repeat the same
    # block index (no extra DMA) and never walk into the other core's tiles.
    count_c = jnp.clip(num_active - c * half, 0, half)
    jloc = jnp.minimum(j, jnp.maximum(count_c - 1, 0))
    blk = jnp.minimum(first + c * half + jloc, last)
    return (0, blk)


def _out_index_map(c, j, mm):
    return (c, 0)


def _range_mae_kernel(mm_ref, x_ref, y_ref, out_ref):
    c = pl.program_id(0)      # core split ("parallel")
    j = pl.program_id(1)      # tiles within this core's share ("arbitrary")
    tn = x_ref.shape[1]

    min_ind = mm_ref[0]
    max_ind = mm_ref[1]
    first_blk = mm_ref[2]
    half = mm_ref[4]
    num_active = mm_ref[5]

    @pl.when(j == 0)
    def _():
        out_ref[...] = jnp.zeros_like(out_ref)

    my_count = jnp.clip(num_active - c * half, 0, half)

    @pl.when(j < my_count)
    def _():
        blk = first_blk + c * half + j          # true block (no clamp needed here)
        col0 = blk * tn
        diff = jnp.abs(x_ref[...].astype(jnp.float32) -
                       y_ref[...].astype(jnp.float32))

        interior = (col0 >= min_ind) & (col0 + tn <= max_ind)

        @pl.when(interior)
        def _():
            out_ref[...] += jnp.full(out_ref.shape, jnp.sum(diff),
                                     dtype=jnp.float32)

        @pl.when(jnp.logical_not(interior))
        def _():
            col = col0 + jax.lax.broadcasted_iota(jnp.int32, diff.shape, 1)
            in_range = (col >= min_ind) & (col < max_ind)
            out_ref[...] += jnp.full(out_ref.shape,
                                     jnp.sum(jnp.where(in_range, diff, 0.0)),
                                     dtype=jnp.float32)


def _pick_tile(N, B, *, max_tile_bytes=2 << 20, max_tn=2048):
    """Largest multiple of 128 dividing N, capped by a VMEM byte budget."""
    assert N % 128 == 0, "spectral length must be a multiple of 128"
    best = None
    cand = 128
    while cand <= min(N, max_tn):
        if N % cand == 0 and B * cand * 4 <= max_tile_bytes:
            best = cand
        cand += 128
    if best is None:
        best = 128  # huge B: still correct, just more grid steps
        # TODO(synk): also tile the batch axis for very large B instead of
        # shrinking the N tile.
    return best


def range_mae_loss(x, y, ppm):
    B, N = x.shape
    tn = _pick_tile(N, B)
    num_blocks = N // tn
    half_max = (num_blocks + 1) // 2            # worst-case blocks per core

    min_ind, max_ind = _compute_range_indices(ppm)
    min_ind = min_ind.astype(jnp.int32)
    max_ind = max_ind.astype(jnp.int32)
    count = jnp.maximum(max_ind - min_ind, 0)

    first_blk = jnp.clip(min_ind // tn, 0, num_blocks - 1)
    last_blk = jnp.clip((max_ind - 1) // tn, 0, num_blocks - 1)
    last_blk = jnp.maximum(last_blk, first_blk)
    num_active = jnp.where(count > 0, last_blk - first_blk + 1, 0)
    half = (num_active + 1) // 2

    mm = jnp.stack([min_ind, max_ind, first_blk, last_blk,
                    half, num_active]).astype(jnp.int32)

    # per-core partial sums: core c writes block (c, 0) of a (16, 128) buffer;
    # only element [c*8, 0] is read back (the whole block holds the same value).
    out = pl.pallas_call(
        _range_mae_kernel,
        out_shape=jax.ShapeDtypeStruct((16, 128), jnp.float32),
        grid_spec=pltpu.PrefetchScalarGridSpec(
            num_scalar_prefetch=1,
            grid=(2, half_max),
            in_specs=[
                pl.BlockSpec((B, tn), _in_index_map),
                pl.BlockSpec((B, tn), _in_index_map),
            ],
            out_specs=pl.BlockSpec((8, 128), _out_index_map),
        ),
        compiler_params=pltpu.CompilerParams(
            dimension_semantics=("parallel", "arbitrary"),
            vmem_limit_bytes=32 << 20,
        ),
    )(mm, x, y)

    total = out[0, 0] + out[8, 0]
    # mean(dim=1).mean(dim=0) == total / (count * B) since all rows share the range
    return total / (count.astype(jnp.float32) * jnp.float32(B))


if __name__ == "__main__":
    key = jax.random.PRNGKey(0)
    kx, ky = jax.random.split(key)

    B, N = 4, 256
    x = jax.random.normal(kx, (B, N), dtype=jnp.float32)
    y = jax.random.normal(ky, (B, N), dtype=jnp.float32)
    # descending ppm axis (8.0 ppm -> 0.0 ppm), standard NMR convention
    ppm = jnp.linspace(8.0, 0.0, N, dtype=jnp.float32)

    loss = jax.block_until_ready(range_mae_loss(x, y, ppm))

    # pure-JAX reference (same math as the PyTorch module, concrete slice)
    mi, ma = _compute_range_indices(ppm)
    mi, ma = int(mi), int(ma)
    ref = jnp.mean(jnp.mean(jnp.abs(x[:, mi:ma] - y[:, mi:ma]), axis=1), axis=0)
    assert jnp.allclose(loss, ref, rtol=1e-5, atol=1e-6), (loss, ref)

    print("KERNEL_OK")
</pallas_src>

<mosaic_0001>
module attributes {stable_mosaic.version = 11 : i64} {
  func.func @_range_mae_kernel(%arg0: i32, %arg1: i32, %arg2: memref<6xi32, #tpu.memory_space<smem>>, %arg3: memref<4x256xf32, #tpu.memory_space<vmem>>, %arg4: memref<4x256xf32, #tpu.memory_space<vmem>>, %arg5: memref<8x128xf32, #tpu.memory_space<vmem>>) attributes {dimension_semantics = [#tpu.dimension_semantics<parallel>, #tpu.dimension_semantics<arbitrary>], iteration_bounds = array<i64: 2, 1>, scalar_prefetch = 1 : i64, scratch_operands = 0 : i64, tpu.core_type = #tpu.core_type<tc>, window_params = [{transform_indices = @transform_0, window_bounds = array<i64: 4, 256>}, {transform_indices = @transform_1, window_bounds = array<i64: 4, 256>}, {transform_indices = @transform_2, window_bounds = array<i64: 8, 128>}]} {
    %c0 = arith.constant 0 : index
    %0 = memref.load %arg2[%c0] : memref<6xi32, #tpu.memory_space<smem>>
    %c1 = arith.constant 1 : index
    %1 = memref.load %arg2[%c1] : memref<6xi32, #tpu.memory_space<smem>>
    %c2 = arith.constant 2 : index
    %2 = memref.load %arg2[%c2] : memref<6xi32, #tpu.memory_space<smem>>
    %c4 = arith.constant 4 : index
    %3 = memref.load %arg2[%c4] : memref<6xi32, #tpu.memory_space<smem>>
    %c5 = arith.constant 5 : index
    %4 = memref.load %arg2[%c5] : memref<6xi32, #tpu.memory_space<smem>>
    %c0_i32 = arith.constant 0 : i32
    %5 = arith.cmpi eq, %arg1, %c0_i32 : i32
    %6 = arith.extui %5 : i1 to i32
    %c0_i32_0 = arith.constant 0 : i32
    %7 = arith.cmpi ne, %6, %c0_i32_0 : i32
    scf.if %7 {
      %cst = arith.constant 0.000000e+00 : f32
      %15 = vector.broadcast %cst : f32 to vector<8x128xf32>
      %c0_3 = arith.constant 0 : index
      %c0_4 = arith.constant 0 : index
      %16 = vector.load %arg5[%c0_3, %c0_4] : memref<8x128xf32, #tpu.memory_space<vmem>>, vector<8x128xf32>
      tpu.vector_store %arg5[%c0_3, %c0_4], %15 {strides = array<i32>} : memref<8x128xf32, #tpu.memory_space<vmem>>, vector<8x128xf32>,
    } else {
    }
    %8 = arith.muli %arg0, %3 : i32
    %9 = arith.subi %4, %8 : i32
    %c0_i32_1 = arith.constant 0 : i32
    %10 = arith.maxsi %c0_i32_1, %9 : i32
    %11 = arith.minsi %3, %10 : i32
    %12 = arith.cmpi slt, %arg1, %11 : i32
    %13 = arith.extui %12 : i1 to i32
    %c0_i32_2 = arith.constant 0 : i32
    %14 = arith.cmpi ne, %13, %c0_i32_2 : i32
    scf.if %14 {
      %15 = arith.muli %arg0, %3 : i32
      %16 = arith.addi %2, %15 : i32
      %17 = arith.addi %16, %arg1 : i32
      %c256_i32 = arith.constant 256 : i32
      %18 = arith.muli %17, %c256_i32 : i32
      %c0_3 = arith.constant 0 : index
      %c0_4 = arith.constant 0 : index
      %19 = vector.load %arg3[%c0_3, %c0_4] : memref<4x256xf32, #tpu.memory_space<vmem>>, vector<4x256xf32>
      %c0_5 = arith.constant 0 : index
      %c0_6 = arith.constant 0 : index
      %20 = vector.load %arg4[%c0_5, %c0_6] : memref<4x256xf32, #tpu.memory_space<vmem>>, vector<4x256xf32>
      %21 = arith.subf %19, %20 : vector<4x256xf32>
      %22 = math.absf %21 : vector<4x256xf32>
      %23 = arith.cmpi sge, %18, %0 : i32
      %c256_i32_7 = arith.constant 256 : i32
      %24 = arith.addi %18, %c256_i32_7 : i32
      %25 = arith.cmpi sle, %24, %1 : i32
      %26 = arith.andi %23, %25 : i1
      %27 = arith.extui %26 : i1 to i32
      %c0_i32_8 = arith.constant 0 : i32
      %28 = arith.cmpi ne, %27, %c0_i32_8 : i32
      scf.if %28 {
        %c0_10 = arith.constant 0 : index
        %c0_11 = arith.constant 0 : index
        %32 = vector.load %arg5[%c0_10, %c0_11] : memref<8x128xf32, #tpu.memory_space<vmem>>, vector<8x128xf32>
        %33 = vector.shape_cast %22 : vector<4x256xf32> to vector<1x4x256xf32>
        %cst = arith.constant dense<0.000000e+00> : vector<1xf32>
        %34 = vector.multi_reduction <add>, %33, %cst [1, 2] : vector<1x4x256xf32> to vector<1xf32>
        %35 = vector.shape_cast %34 : vector<1xf32> to vector<1x1x1xf32>
        %36 = vector.extract %35[0, 0, 0] : f32 from vector<1x1x1xf32>
        %37 = vector.broadcast %36 : f32 to vector<8x128xf32>
        %38 = arith.addf %32, %37 : vector<8x128xf32>
        %c0_12 = arith.constant 0 : index
        %c0_13 = arith.constant 0 : index
        %39 = vector.load %arg5[%c0_12, %c0_13] : memref<8x128xf32, #tpu.memory_space<vmem>>, vector<8x128xf32>
        tpu.vector_store %arg5[%c0_12, %c0_13], %38 {strides = array<i32>} : memref<8x128xf32, #tpu.memory_space<vmem>>, vector<8x128xf32>,
      } else {
      }
      %true = arith.constant true
      %29 = arith.xori %26, %true : i1
      %30 = arith.extui %29 : i1 to i32
      %c0_i32_9 = arith.constant 0 : i32
      %31 = arith.cmpi ne, %30, %c0_i32_9 : i32
      scf.if %31 {
        %32 = tpu.iota {dimensions = array<i32: 1>} : vector<4x256xi32>
        %33 = vector.broadcast %18 : i32 to vector<4x256xi32>
        %34 = arith.addi %33, %32 : vector<4x256xi32>
        %35 = vector.broadcast %0 : i32 to vector<4x256xi32>
        %36 = arith.cmpi sge, %34, %35 : vector<4x256xi32>
        %37 = vector.broadcast %1 : i32 to vector<4x256xi32>
        %38 = arith.cmpi slt, %34, %37 : vector<4x256xi32>
        %39 = arith.andi %36, %38 : vector<4x256xi1>
        %c0_10 = arith.constant 0 : index
        %c0_11 = arith.constant 0 : index
        %40 = vector.load %arg5[%c0_10, %c0_11] : memref<8x128xf32, #tpu.memory_space<vmem>>, vector<8x128xf32>
        %cst = arith.constant 0.000000e+00 : f32
        %41 = vector.broadcast %cst : f32 to vector<4x256xf32>
        %42 = arith.select %39, %22, %41 : vector<4x256xi1>, vector<4x256xf32>
        %43 = vector.shape_cast %42 : vector<4x256xf32> to vector<1x4x256xf32>
        %cst_12 = arith.constant dense<0.000000e+00> : vector<1xf32>
        %44 = vector.multi_reduction <add>, %43, %cst_12 [1, 2] : vector<1x4x256xf32> to vector<1xf32>
        %45 = vector.shape_cast %44 : vector<1xf32> to vector<1x1x1xf32>
        %46 = vector.extract %45[0, 0, 0] : f32 from vector<1x1x1xf32>
        %47 = vector.broadcast %46 : f32 to vector<8x128xf32>
        %48 = arith.addf %40, %47 : vector<8x128xf32>
        %c0_13 = arith.constant 0 : index
        %c0_14 = arith.constant 0 : index
        %49 = vector.load %arg5[%c0_13, %c0_14] : memref<8x128xf32, #tpu.memory_space<vmem>>, vector<8x128xf32>
        tpu.vector_store %arg5[%c0_13, %c0_14], %48 {strides = array<i32>} : memref<8x128xf32, #tpu.memory_space<vmem>>, vector<8x128xf32>,
      } else {
      }
    } else {
    }
    return
  }
  func.func @transform_0(%arg0: i32, %arg1: i32, %arg2: memref<6xi32, #tpu.memory_space<smem>>) -> (i32, i32) {
    %c2 = arith.constant 2 : index
    %0 = memref.load %arg2[%c2] : memref<6xi32, #tpu.memory_space<smem>>
    %c3 = arith.constant 3 : index
    %1 = memref.load %arg2[%c3] : memref<6xi32, #tpu.memory_space<smem>>
    %c4 = arith.constant 4 : index
    %2 = memref.load %arg2[%c4] : memref<6xi32, #tpu.memory_space<smem>>
    %c5 = arith.constant 5 : index
    %3 = memref.load %arg2[%c5] : memref<6xi32, #tpu.memory_space<smem>>
    %4 = arith.muli %arg0, %2 : i32
    %5 = arith.subi %3, %4 : i32
    %c0_i32 = arith.constant 0 : i32
    %6 = arith.maxsi %c0_i32, %5 : i32
    %7 = arith.minsi %2, %6 : i32
    %c1_i32 = arith.constant 1 : i32
    %8 = arith.subi %7, %c1_i32 : i32
    %c0_i32_0 = arith.constant 0 : i32
    %9 = arith.maxsi %8, %c0_i32_0 : i32
    %10 = arith.minsi %arg1, %9 : i32
    %11 = arith.muli %arg0, %2 : i32
    %12 = arith.addi %0, %11 : i32
    %13 = arith.addi %12, %10 : i32
    %14 = arith.minsi %13, %1 : i32
    %c0_i32_1 = arith.constant 0 : i32
    %c0_i32_2 = arith.constant 0 : i32
    return %c0_i32_1, %14 : i32, i32
  }
  func.func @transform_1(%arg0: i32, %arg1: i32, %arg2: memref<6xi32, #tpu.memory_space<smem>>) -> (i32, i32) {
    %c2 = arith.constant 2 : index
    %0 = memref.load %arg2[%c2] : memref<6xi32, #tpu.memory_space<smem>>
    %c3 = arith.constant 3 : index
    %1 = memref.load %arg2[%c3] : memref<6xi32, #tpu.memory_space<smem>>
    %c4 = arith.constant 4 : index
    %2 = memref.load %arg2[%c4] : memref<6xi32, #tpu.memory_space<smem>>
    %c5 = arith.constant 5 : index
    %3 = memref.load %arg2[%c5] : memref<6xi32, #tpu.memory_space<smem>>
    %4 = arith.muli %arg0, %2 : i32
    %5 = arith.subi %3, %4 : i32
    %c0_i32 = arith.constant 0 : i32
    %6 = arith.maxsi %c0_i32, %5 : i32
    %7 = arith.minsi %2, %6 : i32
    %c1_i32 = arith.constant 1 : i32
    %8 = arith.subi %7, %c1_i32 : i32
    %c0_i32_0 = arith.constant 0 : i32
    %9 = arith.maxsi %8, %c0_i32_0 : i32
    %10 = arith.minsi %arg1, %9 : i32
    %11 = arith.muli %arg0, %2 : i32
    %12 = arith.addi %0, %11 : i32
    %13 = arith.addi %12, %10 : i32
    %14 = arith.minsi %13, %1 : i32
    %c0_i32_1 = arith.constant 0 : i32
    %c0_i32_2 = arith.constant 0 : i32
    return %c0_i32_1, %14 : i32, i32
  }
  func.func @transform_2(%arg0: i32, %arg1: i32, %arg2: memref<6xi32, #tpu.memory_space<smem>>) -> (i32, i32) {
    %c0_i32 = arith.constant 0 : i32
    %c0_i32_0 = arith.constant 0 : i32
    return %arg0, %c0_i32 : i32, i32
  }
}

</mosaic_0001>

<llo_original>
// kernel: tpu_custom_call.1
$region0: #{tpu_custom_call.1}
  #allocation0 [shape = 'u32[]', space=smem, size = 0x4, offset = 0x4, fixed_abs, tag = 'smem constant byte address 0x4 - core index']
  #allocation1 [shape = 'u32[144,128]{1,0:T(1,128)}', space=vmem, size = 0x12000, scoped, tag = 'internal scratch']
  #allocation2 [shape = 's32[1]{0}', space=sflag, size = 0x4, scoped, tag = 'scoped memory for tpu_custom_call.1']
  #allocation3 [shape = 'u8[512]{0}', space=smem, size = 0x200, scoped, tag = 'prefetched SMEM operand 0']
  %s0 = inlined_call_operand.hbm [shape: s32[6], index: 0, kind: input, shape index: {}]
  %s1 = inlined_call_operand.hbm [shape: f32[4,256], index: 1, kind: input, shape index: {}]
  %s2 = inlined_call_operand.hbm [shape: f32[4,256], index: 2, kind: input, shape index: {}]
  %s3 = inlined_call_operand.hbm [shape: f32[16,128], index: 3, kind: output, shape index: {}]
  %s4 = sld [smem:[#allocation0]]
  $region65: #{tpu_custom_call.1} parent=0
    _
  %s6 = ssub.s32 1, %s4
  %s7 = scalar_select 0, %s6, %s4
  %9 = dma.hbm_to_smem %s0, 16, [#allocation3], [#allocation2]
  %10 = dma.done [#allocation2], 16
  %11 = sfence
  $region1: #{tpu_custom_call.1} parent=0
    #allocation4 [shape = 'u8[8192]{0}', space=vmem, size = 0x2000, scoped, tag = 'input window, operand 1']
    #allocation5 [shape = 's32[2]{0}', space=sflag, size = 0x8, scoped, tag = 'scoped memory for tpu_custom_call.1']
    #allocation6 [shape = 's32[2]{0}', space=sflag, size = 0x8, scoped, tag = 'scoped memory for tpu_custom_call.1']
    #allocation7 [shape = 'u8[8192]{0}', space=vmem, size = 0x2000, scoped, tag = 'input window, operand 2']
    #allocation8 [shape = 's32[2]{0}', space=sflag, size = 0x8, scoped, tag = 'scoped memory for tpu_custom_call.1']
    #allocation9 [shape = 'u8[8192]{0}', space=vmem, size = 0x2000, scoped, tag = 'output window, operand 0']
    %12 = vsyncpa [#allocation5], 0
    %s13 = scalar_lea.sflag [#allocation5], 1
    %14 = vsyncpa %s13, 0
    %15 = vsyncpa [#allocation8], 0
    %s16 = scalar_lea.sflag [#allocation8], 1
    %17 = vsyncpa %s16, 0
    %18 = vsyncpa [#allocation6], 0
    %s19 = scalar_lea.sflag [#allocation6], 1
    %20 = vsyncpa %s19, 0
    loop: start=0, step=1, limit=4
    $region2: #{tpu_custom_call.1} parent=1 // loop_pre_header
      _
    $region3: #{tpu_custom_call.1} parent=1 // loop_header
      %s22 = sphi 0, %s26
      %p23 = scmp.ge.s32.totalorder %s22, 4
      %s29 = sphi 0, %s41
      %s30 = sphi 0, %s37
      %s31 = sphi 0, %s29
      %s32 = sphi 0, %s30
      %s33 = sphi 0, %s31
      %s34 = sphi 0, %s32
      %s82 = sphi 0, %s84
      %s85 = sphi 0, %s82
      %s86 = sphi 0, %s85
      %s102 = sphi 0, %s86
      %s146 = sphi 0, %s148
      %s149 = sphi 0, %s146
      %s150 = sphi 0, %s149
      %s166 = sphi 0, %s150
      %s172 = sphi 0, %s174
      %s175 = sphi 0, %s172
      %s176 = sphi 0, %s175
      %s192 = sphi 0, %s176
    $region4: #{tpu_custom_call.1} parent=1 // loop_header_branch
      %25 = sbr.rel (%p23) target = $region8
    $region5: #{tpu_custom_call.1} parent=1 // loop_body
      %s27 = ssub.s32 %s22, 1
      %s28 = ssub.s32 %s22, 2
      %s35 = sadd.s32 1, %s30
      %p36 = scmp.ge.s32.totalorder %s35, 1
      %s37 = scalar_select %p36, 0, %s35
      %s38 = sadd.s32 1, %s29
      %s39 = scalar_select %p36, %s38, %s29
      %p40 = scmp.ge.s32.totalorder %s39, 2
      %s41 = scalar_select %p40, 0, %s39
      %s42 = sld [smem:[#allocation3 + $0x2]]
      %s43 = sld [smem:[#allocation3 + $0x3]]
      %s44 = sld [smem:[#allocation3 + $0x4]]
      %s45 = sld [smem:[#allocation3 + $0x5]]
      %s46 = smul.u32 %s29, %s44
      %s47 = ssub.s32 %s45, %s46
      %p48 = scmp.gt.s32.totalorder %s47, 0
      %s49 = scalar_select %p48, %s47, 0
      %p50 = scmp.lt.s32.totalorder %s44, %s49
      %s51 = scalar_select %p50, %s44, %s49
      %s52 = ssub.s32 %s51, 1
      %p53 = scmp.gt.s32.totalorder %s52, 0
      %s54 = scalar_select %p53, %s52, 0
      %p55 = scmp.lt.s32.totalorder %s30, %s54
      %s56 = scalar_select %p55, %s30, %s54
      %s57 = sadd.s32 %s42, %s46
      %s58 = sadd.s32 %s57, %s56
      %p59 = scmp.lt.s32.totalorder %s58, %s43
      %s60 = scalar_select %p59, %s58, %s43
      %s61 = sld [smem:[#allocation3 + $0x2]]
      %s62 = sld [smem:[#allocation3 + $0x3]]
      %s63 = sld [smem:[#allocation3 + $0x4]]
      %s64 = sld [smem:[#allocation3 + $0x5]]
      %s65 = smul.u32 %s41, %s63
      %s66 = ssub.s32 %s64, %s65
      %p67 = scmp.gt.s32.totalorder %s66, 0
      %s68 = scalar_select %p67, %s66, 0
      %p69 = scmp.lt.s32.totalorder %s63, %s68
      %s70 = scalar_select %p69, %s63, %s68
      %s71 = ssub.s32 %s70, 1
      %p72 = scmp.gt.s32.totalorder %s71, 0
      %s73 = scalar_select %p72, %s71, 0
      %p74 = scmp.lt.s32.totalorder %s37, %s73
      %s75 = scalar_select %p74, %s37, %s73
      %s76 = sadd.s32 %s61, %s65
      %s77 = sadd.s32 %s76, %s75
      %p78 = scmp.lt.s32.totalorder %s77, %s62
      %s79 = scalar_select %p78, %s77, %s62
      %s80 = ssub.s32 %s60, %s79
      %p81 = scmp.eq.s32.totalorder %s80, 0
      %s83 = sadd.s32 %s82, 1
      %s84 = scalar_select %p81, %s82, %s83
      %p87 = pneg %p81
      %p88 = scmp.eq.s32.totalorder %s22, 1
      %p89 = por %p87, %p88
      %p90 = scmp.ne.s32.totalorder %s82, %s85
      %p91 = scmp.eq.s32.totalorder %s22, 0
      %p92 = por %p90, %p91
      %p93 = scmp.ne.s32.totalorder %s82, %s85
      %p94 = scmp.eq.s32.totalorder %s27, 1
      %p95 = por %p93, %p94
      %p96 = scmp.ne.s32.totalorder %s85, %s86
      %p97 = scmp.eq.s32.totalorder %s27, 0
      %p98 = por %p96, %p97
      %p99 = scmp.ne.s32.totalorder %s85, %s86
      %p100 = scmp.eq.s32.totalorder %s28, 1
      %p101 = por %p99, %p100
      %p103 = scmp.ne.s32.totalorder %s86, %s102
      %p104 = scmp.eq.s32.totalorder %s28, 0
      %p105 = por %p103, %p104
      %s106 = sld [smem:[#allocation3 + $0x2]]
      %s107 = sld [smem:[#allocation3 + $0x3]]
      %s108 = sld [smem:[#allocation3 + $0x4]]
      %s109 = sld [smem:[#allocation3 + $0x5]]
      %s110 = smul.u32 %s29, %s108
      %s111 = ssub.s32 %s109, %s110
      %p112 = scmp.gt.s32.totalorder %s111, 0
      %s113 = scalar_select %p112, %s111, 0
      %p114 = scmp.lt.s32.totalorder %s108, %s113
      %s115 = scalar_select %p114, %s108, %s113
      %s116 = ssub.s32 %s115, 1
      %p117 = scmp.gt.s32.totalorder %s116, 0
      %s118 = scalar_select %p117, %s116, 0
      %p119 = scmp.lt.s32.totalorder %s30, %s118
      %s120 = scalar_select %p119, %s30, %s118
      %s121 = sadd.s32 %s106, %s110
      %s122 = sadd.s32 %s121, %s120
      %p123 = scmp.lt.s32.totalorder %s122, %s107
      %s124 = scalar_select %p123, %s122, %s107
      %s125 = sld [smem:[#allocation3 + $0x2]]
      %s126 = sld [smem:[#allocation3 + $0x3]]
      %s127 = sld [smem:[#allocation3 + $0x4]]
      %s128 = sld [smem:[#allocation3 + $0x5]]
      %s129 = smul.u32 %s41, %s127
      %s130 = ssub.s32 %s128, %s129
      %p131 = scmp.gt.s32.totalorder %s130, 0
      %s132 = scalar_select %p131, %s130, 0
      %p133 = scmp.lt.s32.totalorder %s127, %s132
      %s134 = scalar_select %p133, %s127, %s132
      %s135 = ssub.s32 %s134, 1
      %p136 = scmp.gt.s32.totalorder %s135, 0
      %s137 = scalar_select %p136, %s135, 0
      %p138 = scmp.lt.s32.totalorder %s37, %s137
      %s139 = scalar_select %p138, %s37, %s137
      %s140 = sadd.s32 %s125, %s129
      %s141 = sadd.s32 %s140, %s139
      %p142 = scmp.lt.s32.totalorder %s141, %s126
      %s143 = scalar_select %p142, %s141, %s126
      %s144 = ssub.s32 %s124, %s143
      %p145 = scmp.eq.s32.totalorder %s144, 0
      %s147 = sadd.s32 %s146, 1
      %s148 = scalar_select %p145, %s146, %s147
      %p151 = pneg %p145
      %p152 = scmp.eq.s32.totalorder %s22, 1
      %p153 = por %p151, %p152
      %p154 = scmp.ne.s32.totalorder %s146, %s149
      %p155 = scmp.eq.s32.totalorder %s22, 0
      %p156 = por %p154, %p155
      %p157 = scmp.ne.s32.totalorder %s146, %s149
      %p158 = scmp.eq.s32.totalorder %s27, 1
      %p159 = por %p157, %p158
      %p160 = scmp.ne.s32.totalorder %s149, %s150
      %p161 = scmp.eq.s32.totalorder %s27, 0
      %p162 = por %p160, %p161
      %p163 = scmp.ne.s32.totalorder %s149, %s150
      %p164 = scmp.eq.s32.totalorder %s28, 1
      %p165 = por %p163, %p164
      %p167 = scmp.ne.s32.totalorder %s150, %s166
      %p168 = scmp.eq.s32.totalorder %s28, 0
      %p169 = por %p167, %p168
      %s170 = ssub.s32 %s29, %s41
      %p171 = scmp.eq.s32.totalorder %s170, 0
      %s173 = sadd.s32 %s172, 1
      %s174 = scalar_select %p171, %s172, %s173
      %p177 = pneg %p171
      %p178 = scmp.eq.s32.totalorder %s22, 1
      %p179 = por %p177, %p178
      %p180 = scmp.ne.s32.totalorder %s172, %s175
      %p181 = scmp.eq.s32.totalorder %s22, 0
      %p182 = por %p180, %p181
      %p183 = scmp.ne.s32.totalorder %s172, %s175
      %p184 = scmp.eq.s32.totalorder %s27, 1
      %p185 = por %p183, %p184
      %p186 = scmp.ne.s32.totalorder %s175, %s176
      %p187 = scmp.eq.s32.totalorder %s27, 0
      %p188 = por %p186, %p187
      %p189 = scmp.ne.s32.totalorder %s175, %s176
      %p190 = scmp.eq.s32.totalorder %s28, 1
      %p191 = por %p189, %p190
      %p193 = scmp.ne.s32.totalorder %s176, %s192
      %p194 = scmp.eq.s32.totalorder %s28, 0
      %p195 = por %p193, %p194
      %p196 = scmp.le.s32.totalorder 1, %s22
      %p197 = scmp.lt.s32.totalorder %s22, 3
      %p198 = pnand %p196, %p197
      %p199 = pneg %p198
      // Predicated region
      $region9: #{tpu_custom_call.1} parent=5 // pred_check
        _
      $region10: #{tpu_custom_call.1} parent=5 // pred_check_branch
        %201 = sbr.rel (%p198) target = $region12
      $region11: #{tpu_custom_call.1} parent=5 // pred_region
        %s202 = ssub.s32 %s22, 1
      $region12: #{tpu_custom_call.1} parent=5 // pred_fallthru
        _
      %p203 = scmp.lt.s32.totalorder %s22, 2
      // Predicated region
      $region13: #{tpu_custom_call.1} parent=5 // pred_check
        %p204 = pneg %p203
      $region14: #{tpu_custom_call.1} parent=5 // pred_check_branch
        %206 = sbr.rel (%p204) target = $region16
      $region15: #{tpu_custom_call.1} parent=5 // pred_region
        // Predicated region
        $region17: #{tpu_custom_call.1} parent=15 // pred_check
          %p207 = pneg %p92
        $region18: #{tpu_custom_call.1} parent=15 // pred_check_branch
          %209 = sbr.rel (%p207) target = $region20
        $region19: #{tpu_custom_call.1} parent=15 // pred_region
          %s210 = sand.u32 %s82, 1
          %s211 = scalar_lea.sflag [#allocation5], %s210
          %s212 = sand.u32 %s82, 1
          %s213 = smul.addr %s212, 8
          %s214 = scalar_lea.vmem [#allocation4], %s213
          %s215 = sld [smem:[#allocation3 + $0x2]]
          %s216 = sld [smem:[#allocation3 + $0x3]]
          %s217 = sld [smem:[#allocation3 + $0x4]]
          %s218 = sld [smem:[#allocation3 + $0x5]]
          %s219 = smul.u32 %s29, %s217
          %s220 = ssub.s32 %s218, %s219
          %p221 = scmp.gt.s32.totalorder %s220, 0
          %s222 = scalar_select %p221, %s220, 0
          %p223 = scmp.lt.s32.totalorder %s217, %s222
          %s224 = scalar_select %p223, %s217, %s222
          %s225 = ssub.s32 %s224, 1
          %p226 = scmp.gt.s32.totalorder %s225, 0
          %s227 = scalar_select %p226, %s225, 0
          %p228 = scmp.lt.s32.totalorder %s30, %s227
          %s229 = scalar_select %p228, %s30, %s227
          %s230 = sadd.s32 %s215, %s219
          %s231 = sadd.s32 %s230, %s229
          %p232 = scmp.lt.s32.totalorder %s231, %s216
          %s233 = scalar_select %p232, %s231, %s216
          %s234 = smul.u32 2, %s233
          %s236 = ssub.s32 128, 128
          %237 = vsyncadd %s211, %s236
          %s238 = smul.addr %s234, 64
          %s239 = scalar_lea.hbm %s1, %s238
          %s241 = sshll.u32 %s214, 4
          %s242 = int_to_ptr.vmem [resolvable:$true] %s241
          %244 = dma.hbm_to_vmem [thread:$0]  %s239, 128, %s242, %s211
        $region20: #{tpu_custom_call.1} parent=15 // pred_fallthru
          _
        // Predicated region
        $region21: #{tpu_custom_call.1} parent=15 // pred_check
          %p245 = pneg %p156
        $region22: #{tpu_custom_call.1} parent=15 // pred_check_branch
          %247 = sbr.rel (%p245) target = $region24
        $region23: #{tpu_custom_call.1} parent=15 // pred_region
          %s248 = sand.u32 %s146, 1
          %s249 = scalar_lea.sflag [#allocation8], %s248
          %s250 = sand.u32 %s146, 1
          %s251 = smul.addr %s250, 8
          %s252 = scalar_lea.vmem [#allocation7], %s251
          %s253 = sld [smem:[#allocation3 + $0x2]]
          %s254 = sld [smem:[#allocation3 + $0x3]]
          %s255 = sld [smem:[#allocation3 + $0x4]]
          %s256 = sld [smem:[#allocation3 + $0x5]]
          %s257 = smul.u32 %s29, %s255
          %s258 = ssub.s32 %s256, %s257
          %p259 = scmp.gt.s32.totalorder %s258, 0
          %s260 = scalar_select %p259, %s258, 0
          %p261 = scmp.lt.s32.totalorder %s255, %s260
          %s262 = scalar_select %p261, %s255, %s260
          %s263 = ssub.s32 %s262, 1
          %p264 = scmp.gt.s32.totalorder %s263, 0
          %s265 = scalar_select %p264, %s263, 0
          %p266 = scmp.lt.s32.totalorder %s30, %s265
          %s267 = scalar_select %p266, %s30, %s265
          %s268 = sadd.s32 %s253, %s257
          %s269 = sadd.s32 %s268, %s267
          %p270 = scmp.lt.s32.totalorder %s269, %s254
          %s271 = scalar_select %p270, %s269, %s254
          %s272 = smul.u32 2, %s271
          %s274 = ssub.s32 128, 128
          %275 = vsyncadd %s249, %s274
          %s276 = smul.addr %s272, 64
          %s277 = scalar_lea.hbm %s2, %s276
          %s279 = sshll.u32 %s252, 4
          %s280 = int_to_ptr.vmem [resolvable:$true] %s279
          %282 = dma.hbm_to_vmem [thread:$0]  %s277, 128, %s280, %s249
        $region24: #{tpu_custom_call.1} parent=15 // pred_fallthru
          _
      $region16: #{tpu_custom_call.1} parent=5 // pred_fallthru
        _
      %p283 = scmp.le.s32.totalorder 1, %s22
      %p284 = scmp.lt.s32.totalorder %s22, 3
      %p285 = pnand %p283, %p284
      %p286 = pneg %p285
      // Predicated region
      $region25: #{tpu_custom_call.1} parent=5 // pred_check
        _
      $region26: #{tpu_custom_call.1} parent=5 // pred_check_branch
        %288 = sbr.rel (%p285) target = $region28
      $region27: #{tpu_custom_call.1} parent=5 // pred_region
        %s289 = ssub.s32 %s22, 1
        %s290 = sand.u32 %s85, 1
        %s291 = scalar_lea.sflag [#allocation5], %s290
        %s292 = sand.u32 %s85, 1
        %s293 = smul.addr %s292, 8
        %s294 = scalar_lea.vmem [#allocation4], %s293
        // Predicated region
        $region29: #{tpu_custom_call.1} parent=27 // pred_check
          %p295 = pneg %p98
        $region30: #{tpu_custom_call.1} parent=27 // pred_check_branch
          %297 = sbr.rel (%p295) target = $region32
        $region31: #{tpu_custom_call.1} parent=27 // pred_region
          %298 = dma.done %s291, 128
        $region32: #{tpu_custom_call.1} parent=27 // pred_fallthru
          _
        %s299 = sand.u32 %s149, 1
        %s300 = scalar_lea.sflag [#allocation8], %s299
        %s301 = sand.u32 %s149, 1
        %s302 = smul.addr %s301, 8
        %s303 = scalar_lea.vmem [#allocation7], %s302
        // Predicated region
        $region33: #{tpu_custom_call.1} parent=27 // pred_check
          %p304 = pneg %p162
        $region34: #{tpu_custom_call.1} parent=27 // pred_check_branch
          %306 = sbr.rel (%p304) target = $region36
        $region35: #{tpu_custom_call.1} parent=27 // pred_region
          %307 = dma.done %s300, 128
        $region36: #{tpu_custom_call.1} parent=27 // pred_fallthru
          _
        %s308 = sand.u32 %s85, 1
        %s309 = scalar_lea.sflag [#allocation5], %s308
        %s310 = sand.u32 %s85, 1
        %s311 = smul.addr %s310, 8
        %s312 = scalar_lea.vmem [#allocation4], %s311
        %p313 = pneg %p98
        %p314 = pneg %p95
        %s315 = sand.u32 %s149, 1
        %s316 = scalar_lea.sflag [#allocation8], %s315
        %s317 = sand.u32 %s149, 1
        %s318 = smul.addr %s317, 8
        %s319 = scalar_lea.vmem [#allocation7], %s318
        %p320 = pneg %p162
        %p321 = pneg %p159
        %p322 = pneg %p188
        %p323 = pneg %p185
        %s324 = sand.u32 %s175, 1
        %s325 = scalar_lea.sflag [#allocation6], %s324
        %s326 = sand.u32 %s175, 1
        %s327 = smul.addr %s326, 8
        %s328 = scalar_lea.vmem [#allocation9], %s327
        %s329 = sld [smem:[#allocation3 + $0x2]]
        %s330 = sld [smem:[#allocation3 + $0x3]]
        %s331 = sld [smem:[#allocation3 + $0x4]]
        %s332 = sld [smem:[#allocation3 + $0x5]]
        %s333 = smul.u32 %s31, %s331
        %s334 = ssub.s32 %s332, %s333
        %p335 = scmp.gt.s32.totalorder %s334, 0
        %s336 = scalar_select %p335, %s334, 0
        %p337 = scmp.lt.s32.totalorder %s331, %s336
        %s338 = scalar_select %p337, %s331, %s336
        %s339 = ssub.s32 %s338, 1
        %p340 = scmp.gt.s32.totalorder %s339, 0
        %s341 = scalar_select %p340, %s339, 0
        %p342 = scmp.lt.s32.totalorder %s32, %s341
        %s343 = scalar_select %p342, %s32, %s341
        %s344 = sadd.s32 %s329, %s333
        %s345 = sadd.s32 %s344, %s343
        %p346 = scmp.lt.s32.totalorder %s345, %s330
        %s347 = scalar_select %p346, %s345, %s330
        %s348 = smul.u32 2, %s347
        %s349 = sld [smem:[#allocation3 + $0x2]]
        %s350 = sld [smem:[#allocation3 + $0x3]]
        %s351 = sld [smem:[#allocation3 + $0x4]]
        %s352 = sld [smem:[#allocation3 + $0x5]]
        %s353 = smul.u32 %s31, %s351
        %s354 = ssub.s32 %s352, %s353
        %p355 = scmp.gt.s32.totalorder %s354, 0
        %s356 = scalar_select %p355, %s354, 0
        %p357 = scmp.lt.s32.totalorder %s351, %s356
        %s358 = scalar_select %p357, %s351, %s356
        %s359 = ssub.s32 %s358, 1
        %p360 = scmp.gt.s32.totalorder %s359, 0
        %s361 = scalar_select %p360, %s359, 0
        %p362 = scmp.lt.s32.totalorder %s32, %s361
        %s363 = scalar_select %p362, %s32, %s361
        %s364 = sadd.s32 %s349, %s353
        %s365 = sadd.s32 %s364, %s363
        %p366 = scmp.lt.s32.totalorder %s365, %s350
        %s367 = scalar_select %p366, %s365, %s350
        %s368 = smul.u32 2, %s367
        %s369 = sld [smem:[#allocation3]]
        %s370 = sld [smem:[#allocation3 + $0x1]]
        %s371 = sld [smem:[#allocation3 + $0x2]]
        %s372 = sld [smem:[#allocation3 + $0x4]]
        %s373 = sld [smem:[#allocation3 + $0x5]]
        %p374 = scmp.eq.s32.totalorder %s32, 0
        // Predicated region
        $region37: #{tpu_custom_call.1} parent=27 // pred_check
          %p375 = pneg %p374
        $region38: #{tpu_custom_call.1} parent=27 // pred_check_branch
          %377 = sbr.rel (%p375) target = $region40
        $region39: #{tpu_custom_call.1} parent=27 // pred_region
          %378 = vst [vmem:[%s328] sm:$0xff] 0.0
        $region40: #{tpu_custom_call.1} parent=27 // pred_fallthru
          _
        %s379 = smul.u32 %s31, %s372
        %s380 = ssub.s32 %s373, %s379
        %p381 = scmp.gt.s32.totalorder %s380, 0
        %s382 = scalar_select %p381, %s380, 0
        %p383 = scmp.lt.s32.totalorder %s372, %s382
        %s384 = scalar_select %p383, %s372, %s382
        %p385 = scmp.lt.s32.totalorder %s32, %s384
        // Predicated region
        $region41: #{tpu_custom_call.1} parent=27 // pred_check
          %p386 = pneg %p385
        $region42: #{tpu_custom_call.1} parent=27 // pred_check_branch
          %388 = sbr.rel (%p386) target = $region44
        $region43: #{tpu_custom_call.1} parent=27 // pred_region
          %s389 = sadd.s32 %s371, %s379
          %s390 = sadd.s32 %s389, %s32
          %s391 = smul.u32 %s390, 256
          %v392 = vld [vmem:[%s294] sm:$0xff]
          %v393 = vld [vmem:[%s303] sm:$0xff]
          %v394 = vsub.f32 %v392, %v393
          %v395 = vand.u32 2147483647, %v394
          %p396 = scmp.ge.s32.totalorder %s391, %s369
          %s397 = sadd.s32 %s391, 256
          %p398 = scmp.le.s32.totalorder %s397, %s370
          %p399 = pnand %p396, %p398
          %p400 = pneg %p399
          // Predicated region
          $region45: #{tpu_custom_call.1} parent=43 // pred_check
            _
          $region46: #{tpu_custom_call.1} parent=43 // pred_check_branch
            %402 = sbr.rel (%p399) target = $region48
          $region47: #{tpu_custom_call.1} parent=43 // pred_region
            %v403 = vld [vmem:[%s328] sm:$0xff]
            %v405 = vcombine.high %v395, %v395
            %vm407 = vcmask 1043456
            %v408 = vsel %vm407, %v395, 0.0
            %v409 = vsel %vm407, %v405, 0.0
            %v410 = vadd.f32 %v408, %v409
            %411 = vadd.xlane.f32.xlu0 %v410
            %v412 = vpop.xlane.xlu0 %411
            %v413 = vrot.slane %v412, 4
            %v414 = vadd.f32 %v412, %v413
            %v415 = vrot.slane %v414, 2
            %v416 = vadd.f32 %v414, %v415
            %v417 = vrot.slane %v416, 1
            %v418 = vadd.f32 %v416, %v417
            %s419 = vtos %v418
            %v420 = vstv %s419
            %v421 = vadd.f32 %v403, %v420
            %422 = vst [vmem:[%s328] sm:$0xff] %v421
          $region48: #{tpu_custom_call.1} parent=43 // pred_fallthru
            _
          %p423 = pneg %p400
          // Predicated region
          $region49: #{tpu_custom_call.1} parent=43 // pred_check
            _
          $region50: #{tpu_custom_call.1} parent=43 // pred_check_branch
            %425 = sbr.rel (%p400) target = $region52
          $region51: #{tpu_custom_call.1} parent=43 // pred_region
            %v426 = vlaneseq
            %v427 = vand.u32 %v426, 127
            %v428 = vadd.s32 %v427, 128
            %v429 = vstv %s391
            %v430 = vadd.s32 %v429, %v427
            %v431 = vadd.s32 %v429, %v428
            %v432 = vstv %s369
            %vm433 = vcmp.ge.s32.totalorder %v430, %v432
            %vm434 = vcmp.ge.s32.totalorder %v431, %v432
            %v435 = vstv %s370
            %vm436 = vcmp.lt.s32.totalorder %v430, %v435
            %vm437 = vcmp.lt.s32.totalorder %v431, %v435
            %vm438 = vmand %vm433, %vm436
            %vm439 = vmand %vm434, %vm437
            %v440 = vld [vmem:[%s328] sm:$0xff]
            %v442 = vcombine.high %v395, %v395
            %v444 = vsel %vm438, %v395, 0.0
            %v445 = vsel %vm439, %v442, 0.0
            %vm446 = vcmask 1043456
            %v447 = vsel %vm446, %v444, 0.0
            %v448 = vsel %vm446, %v445, 0.0
            %v449 = vadd.f32 %v447, %v448
            %450 = vadd.xlane.f32.xlu0 %v449
            %v451 = vpop.xlane.xlu0 %450
            %v452 = vrot.slane %v451, 4
            %v453 = vadd.f32 %v451, %v452
            %v454 = vrot.slane %v453, 2
            %v455 = vadd.f32 %v453, %v454
            %v456 = vrot.slane %v455, 1
            %v457 = vadd.f32 %v455, %v456
            %s458 = vtos %v457
            %v459 = vstv %s458
            %v460 = vadd.f32 %v440, %v459
            %461 = vst [vmem:[%s328] sm:$0xff] %v460
          $region52: #{tpu_custom_call.1} parent=43 // pred_fallthru
            _
        $region44: #{tpu_custom_call.1} parent=27 // pred_fallthru
          _
        %s462 = sand.u32 %s175, 1
        %s463 = scalar_lea.sflag [#allocation6], %s462
        %s464 = sand.u32 %s175, 1
        %s465 = smul.addr %s464, 8
        %s466 = scalar_lea.vmem [#allocation9], %s465
        // Predicated region
        $region53: #{tpu_custom_call.1} parent=27 // pred_check
          %p467 = pneg %p185
        $region54: #{tpu_custom_call.1} parent=27 // pred_check_branch
          %469 = sbr.rel (%p467) target = $region56
        $region55: #{tpu_custom_call.1} parent=27 // pred_region
          %s471 = ssub.s32 128, 128
          %472 = vsyncadd %s463, %s471
          %s473 = smul.addr %s31, 128
          %s474 = scalar_lea.hbm %s3, %s473
          %s476 = sshll.u32 %s466, 4
          %s477 = int_to_ptr.vmem [resolvable:$true] %s476
          %479 = dma.vmem_to_hbm [thread:$0]  %s477, 128, %s474, %s463
        $region56: #{tpu_custom_call.1} parent=27 // pred_fallthru
          _
      $region28: #{tpu_custom_call.1} parent=5 // pred_fallthru
        _
      %p480 = scmp.le.s32.totalorder 2, %s22
      // Predicated region
      $region57: #{tpu_custom_call.1} parent=5 // pred_check
        %p481 = pneg %p480
      $region58: #{tpu_custom_call.1} parent=5 // pred_check_branch
        %483 = sbr.rel (%p481) target = $region60
      $region59: #{tpu_custom_call.1} parent=5 // pred_region
        %s484 = ssub.s32 %s22, 2
        // Predicated region
        $region61: #{tpu_custom_call.1} parent=59 // pred_check
          %p485 = pneg %p191
        $region62: #{tpu_custom_call.1} parent=59 // pred_check_branch
          %487 = sbr.rel (%p485) target = $region64
        $region63: #{tpu_custom_call.1} parent=59 // pred_region
          %s488 = sand.u32 %s176, 1
          %s489 = scalar_lea.sflag [#allocation6], %s488
          %s490 = sand.u32 %s176, 1
          %s491 = smul.addr %s490, 8
          %s492 = scalar_lea.vmem [#allocation9], %s491
          %493 = dma.done %s489, 128
        $region64: #{tpu_custom_call.1} parent=59 // pred_fallthru
          _
      $region60: #{tpu_custom_call.1} parent=5 // pred_fallthru
        _
    $region6: #{tpu_custom_call.1} parent=1 // loop_footer
      %s26 = sadd.s32 1, %s22
    $region7: #{tpu_custom_call.1} parent=1 // loop_footer_branch
      %21 = sbr.rel target = $region3
    $region8: #{tpu_custom_call.1} parent=1 // loop_exit
      _
    %494 = vsyncpa [#allocation5], 1
    %s495 = scalar_lea.sflag [#allocation5], 1
    %496 = vsyncpa %s495, 1
    %497 = vsyncpa [#allocation8], 1
    %s498 = scalar_lea.sflag [#allocation8], 1
    %499 = vsyncpa %s498, 1
    %500 = vsyncpa [#allocation6], 1
    %s501 = scalar_lea.sflag [#allocation6], 1
    %502 = vsyncpa %s501, 1

</llo_original>
